<compile_context>
chip_gen: v6e
topology: v6e:2x2x1
jax: 0.10.0
libtpu: 0.0.40
codegen_flags: <defaults>
</compile_context>

<pallas_src>
import functools

import jax
import jax.numpy as jnp
from jax import lax
from jax.experimental import pallas as pl
from jax.experimental.pallas import tpu as pltpu


def _round_up(x, m):
    return ((x + m - 1) // m) * m


def _vmem_limit_bytes():
    """Scoped VMEM limit: ~half of physical capacity, robust to query failure."""
    try:
        cap = int(pltpu.get_tpu_info().vmem_capacity_bytes)
    except Exception:
        cap = 64 * 1024 * 1024
    return min(max(cap // 2, 32 * 1024 * 1024), 96 * 1024 * 1024)


def _choose_tile_n(n, c, itemsize, vmem_limit):
    """Rows per logits tile.

    Per-row VMEM cost (lane-padded C):
      2 * itemsize   : double-buffered native-dtype logits tile
      4 * 4 bytes    : ~4 live f32 [tile_n, C_lanes] temporaries in the kernel
    plus the lane-padded, double-buffered labels tile.
    """
    c_lanes = _round_up(max(c, 1), 128)
    budget = int(vmem_limit * 0.6)                  # headroom for scratch / pipeline
    per_row = c_lanes * (2 * max(itemsize, 1) + 4 * 4)
    per_row += 2 * 128 * 4                          # labels tile (lane padded, 2 bufs)
    rows = budget // max(per_row, 1)
    rows = max(8, min(int(rows), 2048))
    rows -= rows % 8                                # sublane multiple
    return min(rows, _round_up(max(n, 1), 8))


def _ce_l2_kernel(logits_ref, labels_ref, l2_ref, out_ref, acc_ref, *,
                  true_n, tile_n):
    ti = pl.program_id(0)   # batch tile (reduction axis)

    @pl.when(ti == 0)
    def _init():
        acc_ref[...] = jnp.zeros_like(acc_ref)

    # ---- cross entropy partial, this batch tile ----
    logits = logits_ref[...].astype(jnp.float32)          # [tile_n, C]
    labels = labels_ref[...]                              # [tile_n, 1] int32

    m = jnp.max(logits, axis=-1, keepdims=True)           # [tile_n, 1]
    shifted = logits - m                                   # reused twice
    sumexp = jnp.sum(jnp.exp(shifted), axis=-1, keepdims=True)
    col_ids = lax.broadcasted_iota(jnp.int32, shifted.shape, 1)
    label_shift = jnp.sum(jnp.where(col_ids == labels, shifted, 0.0),
                          axis=-1, keepdims=True)          # logits[label] - m
    per_row = jnp.log(sumexp) - label_shift                # = lse - logits[label]

    # mask ragged-tail rows (OOB block contents are unspecified; select drops them)
    row_ids = ti * tile_n + lax.broadcasted_iota(jnp.int32, per_row.shape, 0)
    per_row = jnp.where(row_ids < true_n, per_row, 0.0)

    acc_ref[...] += per_row                                # (tile_n, 1), no XLU reduce

    # ---- finalize: one cross-sublane reduce, add L2 term, lane-dense store ----
    @pl.when(ti == pl.num_programs(0) - 1)
    def _finalize():
        inv_n = jnp.float32(1.0 / true_n)
        ce = jnp.sum(acc_ref[...], keepdims=True) * inv_n  # (1, 1)
        total = ce + l2_ref[...]                           # (1, 1)
        out_ref[...] = jnp.broadcast_to(total, out_ref.shape)


def cross_entropy_and_l2_loss(y_pt, y_gt, pre_pro, properties):
    """y_pt: [N, C] logits (any float dtype); y_gt: [N] int labels;
    pre_pro: dict with 'area'/'orientation'/'perimeter' each [N]; properties: [N, 3]."""
    n, c = y_pt.shape
    labels = y_gt.reshape(n, 1).astype(jnp.int32)

    # Tiny O(3N) L2 term computed outside the streamed kernel (perf review):
    # 0.01*(mean_a + mean_o + mean_p) == 0.01 * sum(diff^2) / N
    prepro = jnp.stack(
        [pre_pro["area"], pre_pro["orientation"], pre_pro["perimeter"]], axis=0
    ).astype(jnp.float32)                                  # [3, N]
    diff = prepro - properties.astype(jnp.float32).T       # [3, N]
    l2_term = (jnp.float32(0.01) * jnp.sum(diff * diff)
               * jnp.float32(1.0 / n)).reshape(1, 1)       # (1, 1) f32

    vmem_limit = _vmem_limit_bytes()
    tile_n = _choose_tile_n(n, c, jnp.dtype(y_pt.dtype).itemsize, vmem_limit)
    num_tiles = pl.cdiv(n, tile_n)                         # ragged tail OK (masked)

    kernel = functools.partial(_ce_l2_kernel, true_n=n, tile_n=tile_n)

    out = pl.pallas_call(
        kernel,
        out_shape=jax.ShapeDtypeStruct((1, 128), jnp.float32),
        grid_spec=pltpu.PrefetchScalarGridSpec(
            num_scalar_prefetch=0,
            grid=(num_tiles,),
            in_specs=[
                # logits stream: native dtype, tiled over N, auto double-buffered
                pl.BlockSpec((tile_n, c), lambda i: (i, 0)),
                # labels: tiny, tiled alongside the logits
                pl.BlockSpec((tile_n, 1), lambda i: (i, 0)),
                # pre-reduced L2 term: one (1,1) value, constant block index
                pl.BlockSpec((1, 1), lambda i: (0, 0)),
            ],
            out_specs=pl.BlockSpec((1, 128), lambda i: (0, 0)),
            scratch_shapes=[pltpu.VMEM((tile_n, 1), jnp.float32)],
        ),
        compiler_params=pltpu.CompilerParams(
            dimension_semantics=("arbitrary",),
            vmem_limit_bytes=vmem_limit,
        ),
    )(y_pt, labels, l2_term)

    return out[0, 0]


def _reference(y_pt, y_gt, pre_pro, properties):
    logp = jax.nn.log_softmax(y_pt.astype(jnp.float32), axis=-1)
    ce = -jnp.mean(jnp.take_along_axis(logp, y_gt[:, None], axis=1))
    l2a = jnp.mean((pre_pro["area"] - properties[:, 0]) ** 2)
    l2o = jnp.mean((pre_pro["orientation"] - properties[:, 1]) ** 2)
    l2p = jnp.mean((pre_pro["perimeter"] - properties[:, 2]) ** 2)
    return 1.0 * ce + 0.01 * l2a + 0.01 * l2o + 0.01 * l2p


if __name__ == "__main__":
    key = jax.random.PRNGKey(0)
    N, C = 8, 32
    k1, k2, k3, k4, k5, k6 = jax.random.split(key, 6)

    y_pt = jax.random.normal(k1, (N, C), dtype=jnp.float32)
    y_gt = jax.random.randint(k2, (N,), 0, C, dtype=jnp.int32)
    pre_pro = {
        "area": jax.random.normal(k3, (N,), dtype=jnp.float32),
        "orientation": jax.random.normal(k4, (N,), dtype=jnp.float32),
        "perimeter": jax.random.normal(k5, (N,), dtype=jnp.float32),
    }
    properties = jax.random.normal(k6, (N, 3), dtype=jnp.float32)

    loss = cross_entropy_and_l2_loss(y_pt, y_gt, pre_pro, properties)
    loss = jax.block_until_ready(loss)

    ref = _reference(y_pt, y_gt, pre_pro, properties)
    assert jnp.allclose(loss, ref, rtol=1e-5, atol=1e-5), (loss, ref)
    print("KERNEL_OK")
</pallas_src>

<mosaic_0001>
module attributes {stable_mosaic.version = 11 : i64} {
  func.func @_ce_l2_kernel(%arg0: i32, %arg1: memref<8x32xf32, #tpu.memory_space<vmem>>, %arg2: memref<8x1xi32, #tpu.memory_space<vmem>>, %arg3: memref<1x1xf32, #tpu.memory_space<vmem>>, %arg4: memref<1x128xf32, #tpu.memory_space<vmem>>, %arg5: memref<8x1xf32, #tpu.memory_space<vmem>>) attributes {dimension_semantics = [#tpu.dimension_semantics<arbitrary>], iteration_bounds = array<i64: 1>, scalar_prefetch = 0 : i64, scratch_operands = 1 : i64, tpu.core_type = #tpu.core_type<tc>, window_params = [{transform_indices = @transform_0, window_bounds = array<i64: 8, 32>}, {transform_indices = @transform_1, window_bounds = array<i64: 8, 1>}, {pipeline_mode = #tpu.pipeline_mode<synchronous>, transform_indices = @transform_2, window_bounds = array<i64: 1, 1>}, {pipeline_mode = #tpu.pipeline_mode<synchronous>, transform_indices = @transform_3, window_bounds = array<i64: 1, 128>}]} {
    %c0_i32 = arith.constant 0 : i32
    %0 = arith.cmpi eq, %arg0, %c0_i32 : i32
    %1 = arith.extui %0 : i1 to i32
    %c0_i32_0 = arith.constant 0 : i32
    %2 = arith.cmpi ne, %1, %c0_i32_0 : i32
    scf.if %2 {
      %cst_15 = arith.constant 0.000000e+00 : f32
      %35 = vector.broadcast %cst_15 : f32 to vector<8x1xf32>
      %c0_16 = arith.constant 0 : index
      %c0_17 = arith.constant 0 : index
      %36 = vector.load %arg5[%c0_16, %c0_17] : memref<8x1xf32, #tpu.memory_space<vmem>>, vector<8x1xf32>
      tpu.vector_store %arg5[%c0_16, %c0_17], %35 {strides = array<i32>} : memref<8x1xf32, #tpu.memory_space<vmem>>, vector<8x1xf32>,
    } else {
    }
    %c0 = arith.constant 0 : index
    %c0_1 = arith.constant 0 : index
    %3 = vector.load %arg1[%c0, %c0_1] : memref<8x32xf32, #tpu.memory_space<vmem>>, vector<8x32xf32>
    %c0_2 = arith.constant 0 : index
    %c0_3 = arith.constant 0 : index
    %4 = vector.load %arg2[%c0_2, %c0_3] : memref<8x1xi32, #tpu.memory_space<vmem>>, vector<8x1xi32>
    %cst = arith.constant dense<0xFF800000> : vector<8xf32>
    %5 = vector.multi_reduction <maximumf>, %3, %cst [1] : vector<8x32xf32> to vector<8xf32>
    %6 = vector.shape_cast %5 : vector<8xf32> to vector<8x1xf32>
    %7 = vector.broadcast %6 : vector<8x1xf32> to vector<8x32xf32>
    %8 = arith.subf %3, %7 : vector<8x32xf32>
    %9 = math.exp %8 : vector<8x32xf32>
    %cst_4 = arith.constant dense<0.000000e+00> : vector<8xf32>
    %10 = vector.multi_reduction <add>, %9, %cst_4 [1] : vector<8x32xf32> to vector<8xf32>
    %11 = vector.shape_cast %10 : vector<8xf32> to vector<8x1xf32>
    %12 = tpu.iota {dimensions = array<i32: 1>} : vector<8x32xi32>
    %13 = vector.broadcast %4 : vector<8x1xi32> to vector<8x32xi32>
    %14 = arith.cmpi eq, %12, %13 : vector<8x32xi32>
    %cst_5 = arith.constant 0.000000e+00 : f32
    %15 = vector.broadcast %cst_5 : f32 to vector<8x32xf32>
    %16 = arith.select %14, %8, %15 : vector<8x32xi1>, vector<8x32xf32>
    %cst_6 = arith.constant dense<0.000000e+00> : vector<8xf32>
    %17 = vector.multi_reduction <add>, %16, %cst_6 [1] : vector<8x32xf32> to vector<8xf32>
    %18 = vector.shape_cast %17 : vector<8xf32> to vector<8x1xf32>
    %19 = math.log %11 : vector<8x1xf32>
    %20 = arith.subf %19, %18 : vector<8x1xf32>
    %c8_i32 = arith.constant 8 : i32
    %21 = arith.muli %arg0, %c8_i32 : i32
    %22 = tpu.iota {dimensions = array<i32: 0>} : vector<8x1xi32>
    %23 = vector.broadcast %21 : i32 to vector<8x1xi32>
    %24 = arith.addi %23, %22 : vector<8x1xi32>
    %c8_i32_7 = arith.constant 8 : i32
    %25 = vector.broadcast %c8_i32_7 : i32 to vector<8x1xi32>
    %26 = arith.cmpi slt, %24, %25 : vector<8x1xi32>
    %cst_8 = arith.constant 0.000000e+00 : f32
    %27 = vector.broadcast %cst_8 : f32 to vector<8x1xf32>
    %28 = arith.select %26, %20, %27 : vector<8x1xi1>, vector<8x1xf32>
    %c0_9 = arith.constant 0 : index
    %c0_10 = arith.constant 0 : index
    %29 = vector.load %arg5[%c0_9, %c0_10] : memref<8x1xf32, #tpu.memory_space<vmem>>, vector<8x1xf32>
    %30 = arith.addf %29, %28 : vector<8x1xf32>
    %c0_11 = arith.constant 0 : index
    %c0_12 = arith.constant 0 : index
    %31 = vector.load %arg5[%c0_11, %c0_12] : memref<8x1xf32, #tpu.memory_space<vmem>>, vector<8x1xf32>
    tpu.vector_store %arg5[%c0_11, %c0_12], %30 {strides = array<i32>} : memref<8x1xf32, #tpu.memory_space<vmem>>, vector<8x1xf32>,
    %c0_i32_13 = arith.constant 0 : i32
    %32 = arith.cmpi eq, %arg0, %c0_i32_13 : i32
    %33 = arith.extui %32 : i1 to i32
    %c0_i32_14 = arith.constant 0 : i32
    %34 = arith.cmpi ne, %33, %c0_i32_14 : i32
    scf.if %34 {
      %c0_15 = arith.constant 0 : index
      %c0_16 = arith.constant 0 : index
      %35 = vector.load %arg5[%c0_15, %c0_16] : memref<8x1xf32, #tpu.memory_space<vmem>>, vector<8x1xf32>
      %36 = vector.shape_cast %35 : vector<8x1xf32> to vector<1x8x1xf32>
      %cst_17 = arith.constant dense<0.000000e+00> : vector<1xf32>
      %37 = vector.multi_reduction <add>, %36, %cst_17 [1, 2] : vector<1x8x1xf32> to vector<1xf32>
      %38 = vector.shape_cast %37 : vector<1xf32> to vector<1x1x1xf32>
      %39 = vector.extract %38[0, 0, 0] : f32 from vector<1x1x1xf32>
      %40 = vector.broadcast %39 : f32 to vector<1x1xf32>
      %cst_18 = arith.constant 1.250000e-01 : f32
      %41 = vector.broadcast %cst_18 : f32 to vector<1x1xf32>
      %42 = arith.mulf %40, %41 : vector<1x1xf32>
      %c0_19 = arith.constant 0 : index
      %c0_20 = arith.constant 0 : index
      %43 = vector.load %arg3[%c0_19, %c0_20] : memref<1x1xf32, #tpu.memory_space<vmem>>, vector<1x1xf32>
      %44 = arith.addf %42, %43 : vector<1x1xf32>
      %45 = vector.shape_cast %44 : vector<1x1xf32> to vector<1x1xf32>
      %46 = vector.broadcast %45 : vector<1x1xf32> to vector<1x128xf32>
      %c0_21 = arith.constant 0 : index
      %c0_22 = arith.constant 0 : index
      %47 = vector.load %arg4[%c0_21, %c0_22] : memref<1x128xf32, #tpu.memory_space<vmem>>, vector<1x128xf32>
      tpu.vector_store %arg4[%c0_21, %c0_22], %46 {strides = array<i32>} : memref<1x128xf32, #tpu.memory_space<vmem>>, vector<1x128xf32>,
    } else {
    }
    return
  }
  func.func @transform_0(%arg0: i32) -> (i32, i32) {
    %c0_i32 = arith.constant 0 : i32
    %c0_i32_0 = arith.constant 0 : i32
    return %arg0, %c0_i32 : i32, i32
  }
  func.func @transform_1(%arg0: i32) -> (i32, i32) {
    %c0_i32 = arith.constant 0 : i32
    %c0_i32_0 = arith.constant 0 : i32
    return %arg0, %c0_i32 : i32, i32
  }
  func.func @transform_2(%arg0: i32) -> (i32, i32) {
    %c0_i32 = arith.constant 0 : i32
    %c0_i32_0 = arith.constant 0 : i32
    %c0_i32_1 = arith.constant 0 : i32
    return %c0_i32, %c0_i32_0 : i32, i32
  }
  func.func @transform_3(%arg0: i32) -> (i32, i32) {
    %c0_i32 = arith.constant 0 : i32
    %c0_i32_0 = arith.constant 0 : i32
    %c0_i32_1 = arith.constant 0 : i32
    return %c0_i32, %c0_i32_0 : i32, i32
  }
}

</mosaic_0001>

<llo_original>
// kernel: tpu_custom_call.1
$region0: #{tpu_custom_call.1}
  #allocation0 [shape = 'u32[]', space=smem, size = 0x4, offset = 0x4, fixed_abs, tag = 'smem constant byte address 0x4 - core index']
  #allocation1 [shape = 'u32[144,128]{1,0:T(1,128)}', space=vmem, size = 0x12000, scoped, tag = 'internal scratch']
  #allocation2 [shape = 'f32[8,1]{1,0:T(8,128)}', space=vmem, size = 0x1000, scoped, tag = 'scratch operand']
  #allocation3 [shape = 'f32[1,1]{1,0:T(1,128)S(1)}', space=vmem, size = 0x200, scoped, tag = 'scoped memory for tpu_custom_call.1']
  %s0 = inlined_call_operand.vmem [shape: f32[8,32], index: 0, kind: input, shape index: {}]
  %s1 = inlined_call_operand.vmem [shape: s32[8,1], index: 1, kind: input, shape index: {}]
  %s2 = inlined_call_operand.<no memory space> [shape: f32[1,1], index: 2, kind: input, shape index: {}]
  %s3 = inlined_call_operand.hbm [shape: f32[1,128], index: 3, kind: output, shape index: {}]
  %s4 = sld [smem:[#allocation0]]
  $region30: #{tpu_custom_call.1} parent=0
    _
  %s6 = ssub.s32 1, %s4
  %s7 = scalar_select 0, %s6, %s4
  %v8 = vstv %s2
  %9 = vst [vmem:[#allocation3] sm:$0x1] %v8
  $region1: #{tpu_custom_call.1} parent=0
    #allocation4 [shape = 'u8[512]{0}', space=vmem, size = 0x400, scoped, tag = 'output window, operand 0, single buffered']
    #allocation5 [shape = 's32[1]{0}', space=sflag, size = 0x4, scoped, tag = 'scoped memory for tpu_custom_call.1']
    %10 = vsyncpa [#allocation5], 0
    // Predicated region
    $region2: #{tpu_custom_call.1} parent=1 // pred_check
      _
    $region3: #{tpu_custom_call.1} parent=1 // pred_check_branch
      %12 = sbr.rel (0) target = $region5
    $region4: #{tpu_custom_call.1} parent=1 // pred_region
      _
    $region5: #{tpu_custom_call.1} parent=1 // pred_fallthru
      _
    // Predicated region
    $region6: #{tpu_custom_call.1} parent=1 // pred_check
      _
    $region7: #{tpu_custom_call.1} parent=1 // pred_check_branch
      %14 = sbr.rel (0) target = $region9
    $region8: #{tpu_custom_call.1} parent=1 // pred_region
      _
    $region9: #{tpu_custom_call.1} parent=1 // pred_fallthru
      _
    // Predicated region
    $region10: #{tpu_custom_call.1} parent=1 // pred_check
      _
    $region11: #{tpu_custom_call.1} parent=1 // pred_check_branch
      %16 = sbr.rel (0) target = $region13
    $region12: #{tpu_custom_call.1} parent=1 // pred_region
      _
    $region13: #{tpu_custom_call.1} parent=1 // pred_fallthru
      _
    %p17 = scmp.eq.s32.totalorder 0, 0
    // Predicated region
    $region14: #{tpu_custom_call.1} parent=1 // pred_check
      %p18 = pneg %p17
    $region15: #{tpu_custom_call.1} parent=1 // pred_check_branch
      %20 = sbr.rel (%p18) target = $region17
    $region16: #{tpu_custom_call.1} parent=1 // pred_region
      %vm21 = vcmask 7168
      %22 = vst.msk [vmem:[#allocation2] sm:$0xff] %vm21, 0.0
    $region17: #{tpu_custom_call.1} parent=1 // pred_fallthru
      _
    %v23 = vld [vmem:[%s0] sm:$0xff]
    %v24 = vld [vmem:[%s1] sm:$0xff]
    %vm25 = vcmask 261120
    %v26 = vsel %vm25, %v23, -inf
    %27 = vmax.xlane.f32.xlu0 %v26
    %v28 = vpop.xlane.xlu0 %27
    %v29 = vsub.f32 %v23, %v28
    %v30 = vmul.f32 %v29, 1.442695
    %v31 = vpow.pop %v30
    %v32 = vsel %vm25, %v31, 0.0
    %33 = vadd.xlane.f32.xlu0 %v32
    %v34 = vpop.xlane.xlu0 %33
    %v35 = vlaneseq
    %v36 = vand.u32 %v35, 127
    %37 = vset.pattern.permute.xlu0 0
    %38 = vperm.xlu0 %37, %v24
    %v39 = vpop.permute.xlu0 %38
    %vm40 = vcmp.eq.s32.totalorder %v36, %v39
    %v41 = vsel %vm40, %v29, 0.0
    %v42 = vsel %vm25, %v41, 0.0
    %43 = vadd.xlane.f32.xlu0 %v42
    %v44 = vpop.xlane.xlu0 %43
    %v45 = vlog2.pop %v34
    %v46 = vmul.f32 %v45, 0.6931472
    %v47 = vsub.f32 %v46, %v44
    %s48 = smul.u32 0, 8
    %v49 = vlaneseq
    %v50 = vshrl.u32 %v49, 7
    %v51 = vstv %s48
    %v52 = vadd.s32 %v51, %v50
    %vm53 = vcmp.lt.s32.totalorder %v52, 8
    %v54 = vsel %vm53, %v47, 0.0
    %v55 = vld [vmem:[#allocation2] sm:$0xff]
    %v56 = vadd.f32 %v55, %v54
    %vm57 = vcmask 7168
    %58 = vst.msk [vmem:[#allocation2] sm:$0xff] %vm57, %v56
    // Predicated region
    $region18: #{tpu_custom_call.1} parent=1 // pred_check
      %p59 = pneg %p17
    $region19: #{tpu_custom_call.1} parent=1 // pred_check_branch
      %61 = sbr.rel (%p59) target = $region21
    $region20: #{tpu_custom_call.1} parent=1 // pred_region
      %v62 = vld [vmem:[#allocation2] sm:$0xff]
      %v63 = vsel %vm57, %v62, 0.0
      %64 = vadd.xlane.f32.xlu0 %v63
      %v65 = vpop.xlane.xlu0 %64
      %v66 = vrot.slane %v65, 4
      %v67 = vadd.f32 %v65, %v66
      %v68 = vrot.slane %v67, 2
      %v69 = vadd.f32 %v67, %v68
      %v70 = vrot.slane %v69, 1
      %v71 = vadd.f32 %v69, %v70
      %s72 = vtos %v71
      %v73 = vstv %s72
      %v74 = vmul.f32 %v73, 0.125
      %v75 = vld [vmem:[#allocation3] sm:$0x1]
      %v76 = vadd.f32 %v74, %v75
      %78 = vset.pattern.permute.xlu0 0
      %79 = vperm.xlu0 %78, %v76
      %v80 = vpop.permute.xlu0 %79
      %v82 = vlaneseq
      %v83 = vshrl.u32 %v82, 7
      %v84 = vsub.s32 0, %v83
      %v85 = vrot.slane %v80, %v84
      %86 = vst [vmem:[#allocation4] sm:$0x1] %v85
    $region21: #{tpu_custom_call.1} parent=1 // pred_fallthru
      _
    // Predicated region
    $region22: #{tpu_custom_call.1} parent=1 // pred_check
      _
    $region23: #{tpu_custom_call.1} parent=1 // pred_check_branch
      %88 = sbr.rel (0) target = $region25
    $region24: #{tpu_custom_call.1} parent=1 // pred_region
      %s90 = ssub.s32 16, 16
      %91 = vsyncadd [#allocation5], %s90
      %s93 = sshll.u32 [#allocation4], 4
      %s94 = int_to_ptr.vmem [resolvable:$true] %s93
      %96 = dma.vmem_to_hbm [thread:$0]  %s94, 16, %s3, [#allocation5]
    $region25: #{tpu_custom_call.1} parent=1 // pred_fallthru
      _
    // Predicated region
    $region26: #{tpu_custom_call.1} parent=1 // pred_check
      _
    $region27: #{tpu_custom_call.1} parent=1 // pred_check_branch
      %98 = sbr.rel (0) target = $region29
    $region28: #{tpu_custom_call.1} parent=1 // pred_region
      %99 = dma.done [#allocation5], 16
    $region29: #{tpu_custom_call.1} parent=1 // pred_fallthru
      _
    %100 = vsyncpa [#allocation5], 1

</llo_original>
